<compile_context>
chip_gen: v7x
topology: tpu7x:2x2x1
jax: 0.10.0
libtpu: 0.0.40
codegen_flags: <defaults>
</compile_context>

<pallas_src>
import math
import numpy as np

import jax
import jax.numpy as jnp
from jax.experimental import pallas as pl
from jax.experimental.pallas import tpu as pltpu


# -----------------------------------------------------------------------------
# Deterministic parameter construction (mirrors the module's __init__ exactly).
# Channel order matches the module: [lum, by, rg].
# -----------------------------------------------------------------------------
_PARAMS_ITP = (
    ((0.921, 0.0283), (0.105, 0.133), (-0.108, 4.336)),   # lum -> channel 0
    ((0.488, 0.0536), (0.371, 0.386)),                    # by  -> channel 1
    ((0.531, 0.0392), (0.330, 0.494)),                    # rg  -> channel 2
)
_MAX_RANK = max(len(p) for p in _PARAMS_ITP)              # 3


def _kernel_size(samp_per_deg):
    return math.ceil(samp_per_deg / 2) * 2 - 1


def _round_up(x, m):
    return ((x + m - 1) // m) * m


def generate_scielab_kernels(samp_per_deg=50, mode="itp"):
    """Dense (3, K, K) float64 kernels, built exactly like the PyTorch module."""
    assert mode == "itp"
    K = _kernel_size(samp_per_deg)
    radius = K // 2
    yy, xx = np.meshgrid(
        np.arange(-radius, radius + 1, dtype=np.float64),
        np.arange(-radius, radius + 1, dtype=np.float64),
        indexing="ij",
    )
    kernels = []
    for params in _PARAMS_ITP:
        k = np.zeros((K, K), np.float64)
        for w, sigma in params:
            g = np.exp(-1.0 / (sigma * samp_per_deg) ** 2 * (xx ** 2 + yy ** 2))
            k += w * (g / g.sum())
        kernels.append(k / k.sum())
    return np.stack(kernels)                               # (3, K, K) float64


def generate_scielab_separable_factors(samp_per_deg=50, mode="itp"):
    """Exact rank-<=3 factorization: kernel_c == sum_i outer(u_i, v_i).

    Each normalized 2-D Gaussian is outer(g, g) with g a 1-D-normalized
    Gaussian, so the dense kernel equals sum_i (w_i / Z) outer(g_i, g_i) with
    Z = sum_i w_i (the dense kernel's pre-normalization sum).  The component
    weight and final normalization are folded into the column factor v_i.
    """
    assert mode == "itp"
    K = _kernel_size(samp_per_deg)
    radius = K // 2
    d = np.arange(-radius, radius + 1, dtype=np.float64)
    factors = []
    for params in _PARAMS_ITP:
        comps = []
        for w, sigma in params:
            g = np.exp(-1.0 / (sigma * samp_per_deg) ** 2 * d ** 2)
            comps.append((w, g / g.sum()))
        z = sum(w for w, _ in comps)
        factors.append([(g, (w / z) * g) for w, g in comps])
    return factors                 # per channel: list of (u, v) float64 pairs


def _band_matrix(vec, n_in, n_out):
    """B[j, x] = vec[j - x] if 0 <= j - x < K else 0; shape (n_in, n_out)."""
    K = len(vec)
    B = np.zeros((n_in, n_out), np.float64)
    for x in range(n_out):
        B[x:x + K, x] = vec
    return B


# -----------------------------------------------------------------------------
# Pallas kernel: one (n, c, row-strip) grid step = 1 row-pass matmul followed
# by one fused column-pass matmul per 128*k-lane output chunk.
# -----------------------------------------------------------------------------
def _make_kernel(R, TH, S, Scol, CW, n_chunks):
    def kernel(u_ref, v_ref, xp_ref, o_ref, tmp_ref):
        # u_ref  : (R*TH, S)      banded row-pass matrix for this channel
        # v_ref  : (R*Scol, CW)   banded column-pass matrix for this channel
        # xp_ref : (Hp, Wp)       zero-padded plane for (n, c) (strip-resident)
        # o_ref  : (TH, W_pad)    output row strip
        # tmp_ref: (R*TH, Wp)     row-pass scratch
        t = pl.program_id(2)
        row0 = pl.multiple_of(t * TH, 8)        # TH % 8 == 0 -> aligned window

        # ---- Row (sublane-direction) pass: one MXU matmul for all <=3
        #      rank components; each xp row is loaded exactly once per strip.
        slab = xp_ref[pl.ds(row0, S), :]                         # (S, Wp)
        tmp_ref[...] = jnp.dot(u_ref[...], slab,
                               preferred_element_type=jnp.float32)

        # ---- Column (lane-direction) pass: banded MXU matmul per output lane
        #      chunk; the rank components are fused along the contraction dim.
        vmat = v_ref[...]                                        # (R*Scol, CW)
        for ch in range(n_chunks):
            x0 = ch * CW                         # static, 128-aligned offset
            lhs = jnp.concatenate(
                [tmp_ref[i * TH:(i + 1) * TH, x0:x0 + Scol] for i in range(R)],
                axis=-1)                                         # (TH, R*Scol)
            o_ref[:, x0:x0 + CW] = jnp.dot(
                lhs, vmat, preferred_element_type=jnp.float32
            ).astype(o_ref.dtype)

    return kernel


def scielab_spatial_filter(x, samp_per_deg=50, mode="itp",
                           row_strip=32, col_chunk=512):
    """x: (N, 3, H, W) -> (N, 3, H, W) float32 SCIELAB depthwise filtering."""
    N, C, H, W = x.shape
    factors = generate_scielab_separable_factors(samp_per_deg, mode)
    assert C == len(factors) == 3, "SCIELAB filter expects 3 channels"
    R = _MAX_RANK
    K = _kernel_size(samp_per_deg)
    assert K % 2 == 1                  # odd K -> 'same' == symmetric K//2 pad
    pad = K // 2

    # ---- Tiling: every matmul / store dim is a multiple of (8, 128) or a
    #      full array dim.  TH is always a multiple of 8 (no TH=H fallback).
    TH = _round_up(min(row_strip, _round_up(H, 8)), 8)     # output strip rows
    H_pad = _round_up(H, TH)
    T = H_pad // TH
    S = _round_up(TH + K - 1, 8)                           # row-pass slab rows
    Hp = H_pad + (S - TH)                                  # padded plane rows

    CW = min(_round_up(col_chunk, 128), _round_up(W, 128))  # output lane chunk
    n_chunks = int(pl.cdiv(W, CW))
    W_pad = n_chunks * CW
    Scol = _round_up(CW + K - 1, 128)                      # col-pass contraction
    Wp = W_pad + (Scol - CW)                               # padded plane cols

    # ---- 'same' zero padding (K//2 top/left; the rest is strip/chunk slack,
    #      multiplied by zero band-matrix rows, so it never affects valid out).
    xp = jnp.pad(x.astype(jnp.float32),
                 ((0, 0), (0, 0), (pad, Hp - H - pad), (pad, Wp - W - pad)))

    # ---- Compile-time banded (Toeplitz) matrices, one set per channel.
    #      Channels with rank < R get zero blocks (contribute nothing).
    U = np.zeros((C, R * TH, S), np.float64)
    V = np.zeros((C, R * Scol, CW), np.float64)
    for c, comps in enumerate(factors):
        for i, (u, v) in enumerate(comps):
            U[c, i * TH:(i + 1) * TH, :] = _band_matrix(u, S, TH).T
            V[c, i * Scol:(i + 1) * Scol, :] = _band_matrix(v, Scol, CW)
    U = jnp.asarray(U, jnp.float32)
    V = jnp.asarray(V, jnp.float32)

    # ---- VMEM budget from the actual resident buffers (inputs/outputs are
    #      double-buffered by the pipeline), instead of a flat 48 MiB.
    resident = 2 * (Hp * Wp + R * Scol * CW + R * TH * S + TH * W_pad) * 4
    resident += R * TH * Wp * 4                            # tmp scratch
    vmem_limit = int(min(max(resident * 1.4, 32 << 20) + (2 << 20), 100 << 20))
    # TODO(synk): for planes that overflow per-core VMEM (v7x: 64 MiB physical)
    # replace the resident-plane input with an H-halo manual-DMA strip pipeline
    # (memory_space=pl.ANY + pltpu.make_async_copy) instead of raising the limit.

    kernel = _make_kernel(R, TH, S, Scol, CW, n_chunks)

    out = pl.pallas_call(
        kernel,
        out_shape=jax.ShapeDtypeStruct((N, C, H_pad, W_pad), jnp.float32),
        grid=(N, C, T),
        in_specs=[
            # Per-channel banded matrices, selected by the channel grid index.
            pl.BlockSpec((None, R * TH, S), lambda n, c, t: (c, 0, 0)),
            pl.BlockSpec((None, R * Scol, CW), lambda n, c, t: (c, 0, 0)),
            # Whole padded plane per (n, c); block index ignores the strip axis
            # so it stays VMEM-resident (DMA'd once per plane, not per strip).
            pl.BlockSpec((None, None, Hp, Wp), lambda n, c, t: (n, c, 0, 0)),
        ],
        out_specs=pl.BlockSpec((None, None, TH, W_pad),
                               lambda n, c, t: (n, c, t, 0)),
        scratch_shapes=[pltpu.VMEM((R * TH, Wp), jnp.float32)],
        compiler_params=pltpu.CompilerParams(
            dimension_semantics=("parallel", "parallel", "parallel"),
            vmem_limit_bytes=vmem_limit,
        ),
    )(U, V, xp)

    return out[:, :, :H, :W]


# -----------------------------------------------------------------------------
# Demo / correctness check
# -----------------------------------------------------------------------------
if __name__ == "__main__":
    # Module default samp_per_deg=50 gives K=49; samp_per_deg=8 keeps the demo
    # tiny (K=7) while exercising exactly the same code paths.
    samp_per_deg = 8
    N, C, H, W = 2, 3, 16, 16

    key = jax.random.PRNGKey(0)
    x = jax.random.normal(key, (N, C, H, W), dtype=jnp.float32)

    out = scielab_spatial_filter(x, samp_per_deg=samp_per_deg)
    out = jax.block_until_ready(out)

    # Host float64 reference: dense depthwise 'same' cross-correlation with the
    # module's (3, K, K) kernels (kernels are symmetric, so corr == conv).
    kernels = generate_scielab_kernels(samp_per_deg)       # (3, K, K) float64
    Kd = kernels.shape[-1]
    padd = Kd // 2
    xh = np.asarray(x, np.float64)
    xpad = np.zeros((N, C, H + 2 * padd, W + 2 * padd), np.float64)
    xpad[:, :, padd:padd + H, padd:padd + W] = xh
    ref = np.zeros((N, C, H, W), np.float64)
    for ky in range(Kd):
        for kx in range(Kd):
            w = kernels[:, ky, kx].reshape(1, C, 1, 1)
            ref += w * xpad[:, :, ky:ky + H, kx:kx + W]

    # f32 MXU matmul accumulation vs float64 reference; tolerances far tighter
    # than any real indexing/weight bug would produce (errors would be O(0.1+)).
    np.testing.assert_allclose(np.asarray(out), ref, rtol=1e-3, atol=1e-4)

    print("KERNEL_OK")
</pallas_src>

<mosaic_0001>
module attributes {stable_mosaic.version = 11 : i64} {
  func.func @kernel(%arg0: i32, %arg1: i32, %arg2: i32, %arg3: memref<1x48x24xf32, #tpu.memory_space<vmem>>, %arg4: memref<1x768x128xf32, #tpu.memory_space<vmem>>, %arg5: memref<1x1x24x256xf32, #tpu.memory_space<vmem>>, %arg6: memref<1x1x16x128xf32, #tpu.memory_space<vmem>>, %arg7: memref<48x256xf32, #tpu.memory_space<vmem>>) attributes {dimension_semantics = [#tpu.dimension_semantics<parallel>, #tpu.dimension_semantics<parallel>, #tpu.dimension_semantics<parallel>], iteration_bounds = array<i64: 2, 3, 1>, scalar_prefetch = 0 : i64, scratch_operands = 1 : i64, tpu.core_type = #tpu.core_type<tc>, window_params = [{transform_indices = @transform_0, window_bounds = array<i64: 1, 48, 24>}, {transform_indices = @transform_1, window_bounds = array<i64: 1, 768, 128>}, {transform_indices = @transform_2, window_bounds = array<i64: 1, 1, 24, 256>}, {transform_indices = @transform_3, window_bounds = array<i64: 1, 1, 16, 128>}]} {
    %c16_i32 = arith.constant 16 : i32
    %0 = arith.muli %arg2, %c16_i32 : i32
    %1 = tpu.assume_multiple %0, 8 : i32
    %c0 = arith.constant 0 : index
    %c0_0 = arith.constant 0 : index
    %2 = arith.index_cast %1 : i32 to index
    %c0_1 = arith.constant 0 : index
    %3 = vector.load %arg5[%c0, %c0_0, %2, %c0_1] : memref<1x1x24x256xf32, #tpu.memory_space<vmem>>, vector<1x1x24x256xf32>
    %4 = vector.shape_cast %3 : vector<1x1x24x256xf32> to vector<24x256xf32>
    %c0_2 = arith.constant 0 : index
    %c0_3 = arith.constant 0 : index
    %c0_4 = arith.constant 0 : index
    %5 = vector.load %arg3[%c0_2, %c0_3, %c0_4] : memref<1x48x24xf32, #tpu.memory_space<vmem>>, vector<1x48x24xf32>
    %6 = vector.shape_cast %5 : vector<1x48x24xf32> to vector<48x24xf32>
    %cst = arith.constant dense<0.000000e+00> : vector<48x256xf32>
    %7 = tpu.matmul %6, %4, %cst {dimension_numbers = #tpu.dot_dimension_numbers<[1], [0], [0], [1], [0, 0, 1, 1], [], []>} : vector<48x24xf32>, vector<24x256xf32>, vector<48x256xf32> -> vector<48x256xf32>
    %c0_5 = arith.constant 0 : index
    %c0_6 = arith.constant 0 : index
    %8 = vector.load %arg7[%c0_5, %c0_6] : memref<48x256xf32, #tpu.memory_space<vmem>>, vector<48x256xf32>
    tpu.vector_store %arg7[%c0_5, %c0_6], %7 {strides = array<i32>} : memref<48x256xf32, #tpu.memory_space<vmem>>, vector<48x256xf32>,
    %c0_7 = arith.constant 0 : index
    %c0_8 = arith.constant 0 : index
    %c0_9 = arith.constant 0 : index
    %9 = vector.load %arg4[%c0_7, %c0_8, %c0_9] : memref<1x768x128xf32, #tpu.memory_space<vmem>>, vector<1x768x128xf32>
    %10 = vector.shape_cast %9 : vector<1x768x128xf32> to vector<768x128xf32>
    %c0_10 = arith.constant 0 : index
    %c0_11 = arith.constant 0 : index
    %11 = vector.load %arg7[%c0_10, %c0_11] : memref<48x256xf32, #tpu.memory_space<vmem>>, vector<16x256xf32>
    %c16 = arith.constant 16 : index
    %c0_12 = arith.constant 0 : index
    %12 = vector.load %arg7[%c16, %c0_12] : memref<48x256xf32, #tpu.memory_space<vmem>>, vector<16x256xf32>
    %c32 = arith.constant 32 : index
    %c0_13 = arith.constant 0 : index
    %13 = vector.load %arg7[%c32, %c0_13] : memref<48x256xf32, #tpu.memory_space<vmem>>, vector<16x256xf32>
    %14 = tpu.concatenate %11, %12, %13 in 1 : vector<16x256xf32>, vector<16x256xf32>, vector<16x256xf32> -> vector<16x768xf32>
    %cst_14 = arith.constant dense<0.000000e+00> : vector<16x128xf32>
    %15 = tpu.matmul %14, %10, %cst_14 {dimension_numbers = #tpu.dot_dimension_numbers<[1], [0], [0], [1], [0, 0, 1, 1], [], []>} : vector<16x768xf32>, vector<768x128xf32>, vector<16x128xf32> -> vector<16x128xf32>
    %c0_15 = arith.constant 0 : index
    %c0_16 = arith.constant 0 : index
    %c0_17 = arith.constant 0 : index
    %c0_18 = arith.constant 0 : index
    %16 = vector.load %arg6[%c0_15, %c0_16, %c0_17, %c0_18] : memref<1x1x16x128xf32, #tpu.memory_space<vmem>>, vector<1x1x16x128xf32>
    %17 = vector.shape_cast %16 : vector<1x1x16x128xf32> to vector<16x128xf32>
    %18 = vector.shape_cast %15 : vector<16x128xf32> to vector<1x1x16x128xf32>
    tpu.vector_store %arg6[%c0_15, %c0_16, %c0_17, %c0_18], %18 {strides = array<i32>} : memref<1x1x16x128xf32, #tpu.memory_space<vmem>>, vector<1x1x16x128xf32>,
    return
  }
  func.func @transform_0(%arg0: i32, %arg1: i32, %arg2: i32) -> (i32, i32, i32) {
    %c0_i32 = arith.constant 0 : i32
    %c0_i32_0 = arith.constant 0 : i32
    %c0_i32_1 = arith.constant 0 : i32
    return %arg1, %c0_i32, %c0_i32_0 : i32, i32, i32
  }
  func.func @transform_1(%arg0: i32, %arg1: i32, %arg2: i32) -> (i32, i32, i32) {
    %c0_i32 = arith.constant 0 : i32
    %c0_i32_0 = arith.constant 0 : i32
    %c0_i32_1 = arith.constant 0 : i32
    return %arg1, %c0_i32, %c0_i32_0 : i32, i32, i32
  }
  func.func @transform_2(%arg0: i32, %arg1: i32, %arg2: i32) -> (i32, i32, i32, i32) {
    %c0_i32 = arith.constant 0 : i32
    %c0_i32_0 = arith.constant 0 : i32
    %c0_i32_1 = arith.constant 0 : i32
    return %arg0, %arg1, %c0_i32, %c0_i32_0 : i32, i32, i32, i32
  }
  func.func @transform_3(%arg0: i32, %arg1: i32, %arg2: i32) -> (i32, i32, i32, i32) {
    %c0_i32 = arith.constant 0 : i32
    %c0_i32_0 = arith.constant 0 : i32
    return %arg0, %arg1, %arg2, %c0_i32 : i32, i32, i32, i32
  }
}

</mosaic_0001>

<llo_original>
// kernel: tpu_custom_call.1
$region0: #{tpu_custom_call.1}
  #allocation0 [shape = 'u32[]', space=smem, size = 0x4, offset = 0x4, fixed_abs, tag = 'smem constant byte address 0x4 - core index']
  #allocation1 [shape = 'u32[144,128]{1,0:T(1,128)}', space=vmem, size = 0x12000, scoped, tag = 'internal scratch']
  #allocation2 [shape = 'f32[48,256]{1,0:T(8,128)}', space=vmem, size = 0xc000, scoped, tag = 'scratch operand']
  %s0 = inlined_call_operand.vmem [shape: f32[3,48,24], index: 0, kind: input, shape index: {}]
  %s1 = inlined_call_operand.hbm [shape: f32[3,768,128], index: 1, kind: input, shape index: {}]
  %s2 = inlined_call_operand.hbm [shape: f32[2,3,24,256], index: 2, kind: input, shape index: {}]
  %s3 = inlined_call_operand.hbm [shape: f32[2,3,16,128], index: 3, kind: output, shape index: {}]
  %s4 = sld [smem:[#allocation0]]
  $region53: #{tpu_custom_call.1} parent=0
    _
  %s6 = ssub.s32 1, %s4
  %s7 = scalar_select 0, %s6, %s4
  $region1: #{tpu_custom_call.1} parent=0
    #allocation3 [shape = 'u8[786432]{0}', space=vmem, size = 0xc0000, scoped, tag = 'input window, operand 1']
    #allocation4 [shape = 's32[2]{0}', space=sflag, size = 0x8, scoped, tag = 'scoped memory for tpu_custom_call.1']
    #allocation5 [shape = 's32[2]{0}', space=sflag, size = 0x8, scoped, tag = 'scoped memory for tpu_custom_call.1']
    #allocation6 [shape = 'u8[49152]{0}', space=vmem, size = 0xc000, scoped, tag = 'input window, operand 2']
    #allocation7 [shape = 's32[2]{0}', space=sflag, size = 0x8, scoped, tag = 'scoped memory for tpu_custom_call.1']
    #allocation8 [shape = 'u8[16384]{0}', space=vmem, size = 0x4000, scoped, tag = 'output window, operand 0']
    %8 = vsyncpa [#allocation4], 0
    %s9 = scalar_lea.sflag [#allocation4], 1
    %10 = vsyncpa %s9, 0
    %11 = vsyncpa [#allocation7], 0
    %s12 = scalar_lea.sflag [#allocation7], 1
    %13 = vsyncpa %s12, 0
    %14 = vsyncpa [#allocation5], 0
    %s15 = scalar_lea.sflag [#allocation5], 1
    %16 = vsyncpa %s15, 0
    loop: start=0, step=1, limit=8
    $region2: #{tpu_custom_call.1} parent=1 // loop_pre_header
      _
    $region3: #{tpu_custom_call.1} parent=1 // loop_header
      %s18 = sphi 0, %s22
      %p19 = scmp.ge.s32.totalorder %s18, 8
      %s25 = sphi 0, %s44
      %s26 = sphi 0, %s40
      %s27 = sphi 0, %s36
      %s28 = sphi 0, %s25
      %s29 = sphi 0, %s26
      %s30 = sphi 0, %s27
      %s31 = sphi 0, %s28
      %s32 = sphi 0, %s29
      %s33 = sphi 0, %s30
      %s47 = sphi 0, %s49
      %s50 = sphi 0, %s47
      %s51 = sphi 0, %s50
      %s67 = sphi 0, %s51
      %s73 = sphi 0, %s75
      %s76 = sphi 0, %s73
      %s77 = sphi 0, %s76
      %s93 = sphi 0, %s77
      %s101 = sphi 0, %s103
      %s104 = sphi 0, %s101
      %s105 = sphi 0, %s104
      %s121 = sphi 0, %s105
      %s131 = sphi 0, %s133
      %s134 = sphi 0, %s131
      %s135 = sphi 0, %s134
      %s151 = sphi 0, %s135
    $region4: #{tpu_custom_call.1} parent=1 // loop_header_branch
      %21 = sbr.rel (%p19) target = $region8
    $region5: #{tpu_custom_call.1} parent=1 // loop_body
      %s23 = ssub.s32 %s18, 1
      %s24 = ssub.s32 %s18, 2
      %s34 = sadd.s32 1, %s27
      %p35 = scmp.ge.s32.totalorder %s34, 1
      %s36 = scalar_select %p35, 0, %s34
      %s37 = sadd.s32 1, %s26
      %s38 = scalar_select %p35, %s37, %s26
      %p39 = scmp.ge.s32.totalorder %s38, 3
      %s40 = scalar_select %p39, 0, %s38
      %s41 = sadd.s32 1, %s25
      %s42 = scalar_select %p39, %s41, %s25
      %p43 = scmp.ge.s32.totalorder %s42, 2
      %s44 = scalar_select %p43, 0, %s42
      %s45 = ssub.s32 %s26, %s40
      %p46 = scmp.eq.s32.totalorder %s45, 0
      %s48 = sadd.s32 %s47, 1
      %s49 = scalar_select %p46, %s47, %s48
      %p52 = pneg %p46
      %p53 = scmp.eq.s32.totalorder %s18, 5
      %p54 = por %p52, %p53
      %p55 = scmp.ne.s32.totalorder %s47, %s50
      %p56 = scmp.eq.s32.totalorder %s18, 0
      %p57 = por %p55, %p56
      %p58 = scmp.ne.s32.totalorder %s47, %s50
      %p59 = scmp.eq.s32.totalorder %s23, 5
      %p60 = por %p58, %p59
      %p61 = scmp.ne.s32.totalorder %s50, %s51
      %p62 = scmp.eq.s32.totalorder %s23, 0
      %p63 = por %p61, %p62
      %p64 = scmp.ne.s32.totalorder %s50, %s51
      %p65 = scmp.eq.s32.totalorder %s24, 5
      %p66 = por %p64, %p65
      %p68 = scmp.ne.s32.totalorder %s51, %s67
      %p69 = scmp.eq.s32.totalorder %s24, 0
      %p70 = por %p68, %p69
      %s71 = ssub.s32 %s26, %s40
      %p72 = scmp.eq.s32.totalorder %s71, 0
      %s74 = sadd.s32 %s73, 1
      %s75 = scalar_select %p72, %s73, %s74
      %p78 = pneg %p72
      %p79 = scmp.eq.s32.totalorder %s18, 5
      %p80 = por %p78, %p79
      %p81 = scmp.ne.s32.totalorder %s73, %s76
      %p82 = scmp.eq.s32.totalorder %s18, 0
      %p83 = por %p81, %p82
      %p84 = scmp.ne.s32.totalorder %s73, %s76
      %p85 = scmp.eq.s32.totalorder %s23, 5
      %p86 = por %p84, %p85
      %p87 = scmp.ne.s32.totalorder %s76, %s77
      %p88 = scmp.eq.s32.totalorder %s23, 0
      %p89 = por %p87, %p88
      %p90 = scmp.ne.s32.totalorder %s76, %s77
      %p91 = scmp.eq.s32.totalorder %s24, 5
      %p92 = por %p90, %p91
      %p94 = scmp.ne.s32.totalorder %s77, %s93
      %p95 = scmp.eq.s32.totalorder %s24, 0
      %p96 = por %p94, %p95
      %s97 = ssub.s32 %s25, %s44
      %s98 = ssub.s32 %s26, %s40
      %s99 = sor.u32 %s97, %s98
      %p100 = scmp.eq.s32.totalorder %s99, 0
      %s102 = sadd.s32 %s101, 1
      %s103 = scalar_select %p100, %s101, %s102
      %p106 = pneg %p100
      %p107 = scmp.eq.s32.totalorder %s18, 5
      %p108 = por %p106, %p107
      %p109 = scmp.ne.s32.totalorder %s101, %s104
      %p110 = scmp.eq.s32.totalorder %s18, 0
      %p111 = por %p109, %p110
      %p112 = scmp.ne.s32.totalorder %s101, %s104
      %p113 = scmp.eq.s32.totalorder %s23, 5
      %p114 = por %p112, %p113
      %p115 = scmp.ne.s32.totalorder %s104, %s105
      %p116 = scmp.eq.s32.totalorder %s23, 0
      %p117 = por %p115, %p116
      %p118 = scmp.ne.s32.totalorder %s104, %s105
      %p119 = scmp.eq.s32.totalorder %s24, 5
      %p120 = por %p118, %p119
      %p122 = scmp.ne.s32.totalorder %s105, %s121
      %p123 = scmp.eq.s32.totalorder %s24, 0
      %p124 = por %p122, %p123
      %s125 = ssub.s32 %s25, %s44
      %s126 = ssub.s32 %s26, %s40
      %s127 = sor.u32 %s125, %s126
      %s128 = ssub.s32 %s27, %s36
      %s129 = sor.u32 %s127, %s128
      %p130 = scmp.eq.s32.totalorder %s129, 0
      %s132 = sadd.s32 %s131, 1
      %s133 = scalar_select %p130, %s131, %s132
      %p136 = pneg %p130
      %p137 = scmp.eq.s32.totalorder %s18, 5
      %p138 = por %p136, %p137
      %p139 = scmp.ne.s32.totalorder %s131, %s134
      %p140 = scmp.eq.s32.totalorder %s18, 0
      %p141 = por %p139, %p140
      %p142 = scmp.ne.s32.totalorder %s131, %s134
      %p143 = scmp.eq.s32.totalorder %s23, 5
      %p144 = por %p142, %p143
      %p145 = scmp.ne.s32.totalorder %s134, %s135
      %p146 = scmp.eq.s32.totalorder %s23, 0
      %p147 = por %p145, %p146
      %p148 = scmp.ne.s32.totalorder %s134, %s135
      %p149 = scmp.eq.s32.totalorder %s24, 5
      %p150 = por %p148, %p149
      %p152 = scmp.ne.s32.totalorder %s135, %s151
      %p153 = scmp.eq.s32.totalorder %s24, 0
      %p154 = por %p152, %p153
      %p155 = scmp.le.s32.totalorder 1, %s18
      %p156 = scmp.lt.s32.totalorder %s18, 7
      %p157 = pnand %p155, %p156
      %p158 = pneg %p157
      // Predicated region
      $region9: #{tpu_custom_call.1} parent=5 // pred_check
        _
      $region10: #{tpu_custom_call.1} parent=5 // pred_check_branch
        %160 = sbr.rel (%p157) target = $region12
      $region11: #{tpu_custom_call.1} parent=5 // pred_region
        %s161 = ssub.s32 %s18, 1
      $region12: #{tpu_custom_call.1} parent=5 // pred_fallthru
        _
      %p162 = scmp.lt.s32.totalorder %s18, 6
      // Predicated region
      $region13: #{tpu_custom_call.1} parent=5 // pred_check
        %p163 = pneg %p162
      $region14: #{tpu_custom_call.1} parent=5 // pred_check_branch
        %165 = sbr.rel (%p163) target = $region16
      $region15: #{tpu_custom_call.1} parent=5 // pred_region
        // Predicated region
        $region17: #{tpu_custom_call.1} parent=15 // pred_check
          %p166 = pneg %p57
        $region18: #{tpu_custom_call.1} parent=15 // pred_check_branch
          %168 = sbr.rel (%p166) target = $region20
        $region19: #{tpu_custom_call.1} parent=15 // pred_region
          %p169 = scmp.lt.s32.totalorder %s26, 2
          %s170 = scalar_select %p169, %s26, 2
          %s171 = smul.addr %s170, 6
          %s172 = smul.addr %s171, 8
          %s173 = scalar_lea.vmem %s0, %s172
        $region20: #{tpu_custom_call.1} parent=15 // pred_fallthru
          _
        // Predicated region
        $region21: #{tpu_custom_call.1} parent=15 // pred_check
          %p174 = pneg %p83
        $region22: #{tpu_custom_call.1} parent=15 // pred_check_branch
          %176 = sbr.rel (%p174) target = $region24
        $region23: #{tpu_custom_call.1} parent=15 // pred_region
          %s177 = sand.u32 %s73, 1
          %s178 = scalar_lea.sflag [#allocation4], %s177
          %s179 = sand.u32 %s73, 1
          %s180 = smul.addr %s179, 768
          %s181 = scalar_lea.vmem [#allocation3], %s180
          %s183 = ssub.s32 12288, 12288
          %184 = vsyncadd %s178, %s183
          %s185 = smul.addr %s26, 96
          %s186 = smul.addr %s185, 128
          %s187 = scalar_lea.hbm %s1, %s186
          %s188 = sshll.u32 %s181, 4
          %s189 = int_to_ptr.vmem [resolvable:$true] %s188
          %194 = dma.hbm_to_vmem [thread:$0]  %s187, 12288, %s189, %s178, 128, 128, 8
        $region24: #{tpu_custom_call.1} parent=15 // pred_fallthru
          _
        // Predicated region
        $region25: #{tpu_custom_call.1} parent=15 // pred_check
          %p195 = pneg %p111
        $region26: #{tpu_custom_call.1} parent=15 // pred_check_branch
          %197 = sbr.rel (%p195) target = $region28
        $region27: #{tpu_custom_call.1} parent=15 // pred_region
          %s198 = sand.u32 %s101, 1
          %s199 = scalar_lea.sflag [#allocation7], %s198
          %s200 = sand.u32 %s101, 1
          %s201 = smul.addr %s200, 48
          %s202 = scalar_lea.vmem [#allocation6], %s201
          %s204 = ssub.s32 768, 768
          %205 = vsyncadd %s199, %s204
          %s206 = smul.addr %s26, 6
          %s207 = smul.addr %s25, 18
          %s208 = sadd.s32 %s206, %s207
          %s209 = smul.addr %s208, 128
          %s210 = scalar_lea.hbm %s2, %s209
          %s211 = sshll.u32 %s202, 4
          %s212 = int_to_ptr.vmem [resolvable:$true] %s211
          %217 = dma.hbm_to_vmem [thread:$0]  %s210, 768, %s212, %s199, 256, 256, 16
        $region28: #{tpu_custom_call.1} parent=15 // pred_fallthru
          _
      $region16: #{tpu_custom_call.1} parent=5 // pred_fallthru
        _
      %p218 = scmp.le.s32.totalorder 1, %s18
      %p219 = scmp.lt.s32.totalorder %s18, 7
      %p220 = pnand %p218, %p219
      %p221 = pneg %p220
      // Predicated region
      $region29: #{tpu_custom_call.1} parent=5 // pred_check
        _
      $region30: #{tpu_custom_call.1} parent=5 // pred_check_branch
        %223 = sbr.rel (%p220) target = $region32
      $region31: #{tpu_custom_call.1} parent=5 // pred_region
        %s224 = ssub.s32 %s18, 1
        %s225 = sand.u32 %s76, 1
        %s226 = scalar_lea.sflag [#allocation4], %s225
        %s227 = sand.u32 %s76, 1
        %s228 = smul.addr %s227, 768
        %s229 = scalar_lea.vmem [#allocation3], %s228
        // Predicated region
        $region33: #{tpu_custom_call.1} parent=31 // pred_check
          %p230 = pneg %p89
        $region34: #{tpu_custom_call.1} parent=31 // pred_check_branch
          %232 = sbr.rel (%p230) target = $region36
        $region35: #{tpu_custom_call.1} parent=31 // pred_region
          %233 = dma.done %s226, 12288
        $region36: #{tpu_custom_call.1} parent=31 // pred_fallthru
          _
        %s234 = sand.u32 %s104, 1
        %s235 = scalar_lea.sflag [#allocation7], %s234
        %s236 = sand.u32 %s104, 1
        %s237 = smul.addr %s236, 48
        %s238 = scalar_lea.vmem [#allocation6], %s237
        // Predicated region
        $region37: #{tpu_custom_call.1} parent=31 // pred_check
          %p239 = pneg %p117
        $region38: #{tpu_custom_call.1} parent=31 // pred_check_branch
          %241 = sbr.rel (%p239) target = $region40
        $region39: #{tpu_custom_call.1} parent=31 // pred_region
          %242 = dma.done %s235, 768
        $region40: #{tpu_custom_call.1} parent=31 // pred_fallthru
          _
        %p243 = scmp.lt.s32.totalorder %s29, 2
        %s244 = scalar_select %p243, %s29, 2
        %s245 = smul.addr %s244, 6
        %s246 = smul.addr %s245, 8
        %s247 = scalar_lea.vmem %s0, %s246
        %p248 = pneg %p63
        %p249 = pneg %p60
        %s250 = sand.u32 %s76, 1
        %s251 = scalar_lea.sflag [#allocation4], %s250
        %s252 = sand.u32 %s76, 1
        %s253 = smul.addr %s252, 768
        %s254 = scalar_lea.vmem [#allocation3], %s253
        %p255 = pneg %p89
        %p256 = pneg %p86
        %s257 = sand.u32 %s104, 1
        %s258 = scalar_lea.sflag [#allocation7], %s257
        %s259 = sand.u32 %s104, 1
        %s260 = smul.addr %s259, 48
        %s261 = scalar_lea.vmem [#allocation6], %s260
        %p262 = pneg %p117
        %p263 = pneg %p114
        %p264 = pneg %p147
        %p265 = pneg %p144
        %s266 = sand.u32 %s134, 1
        %s267 = scalar_lea.sflag [#allocation5], %s266
        %s268 = sand.u32 %s134, 1
        %s269 = smul.addr %s268, 16
        %s270 = scalar_lea.vmem [#allocation8], %s269
        %p271 = scmp.lt.s32.totalorder %s29, 2
        %s272 = scalar_select %p271, %s29, 2
        %s273 = smul.addr %s272, 6
        %s274 = smul.addr %s273, 8
        %s275 = scalar_lea.vmem %s0, %s274
        %s276 = smul.u32 2, %s30
        %s277 = smul.u32 %s30, 16
        %s278 = sshra.s32 %s277, 3
        %s279 = sand.u32 %s277, 7
        %s280 = smul.u32 %s278, 2
        %s281 = smul.addr %s280, 8
        %s282 = scalar_lea.vmem %s238, %s281 [#allocation6]
        %v283 = vld [vmem:[%s282] sm:$0xff]
        %v284 = vld [vmem:[%s282 + $0x8] sm:$0xff]
        %v285 = vld [vmem:[%s282 + $0x10] sm:$0xff]
        %v286 = vld [vmem:[%s282 + $0x18] sm:$0xff]
        %v287 = vld [vmem:[%s282 + $0x20] sm:$0xff]
        %v288 = vld [vmem:[%s282 + $0x28] sm:$0xff]
        %v289 = vld [vmem:[%s275] sm:$0xff]
        %v290 = vld [vmem:[%s275 + $0x8] sm:$0xff]
        %v291 = vld [vmem:[%s275 + $0x10] sm:$0xff]
        %v292 = vld [vmem:[%s275 + $0x18] sm:$0xff]
        %v293 = vld [vmem:[%s275 + $0x20] sm:$0xff]
        %v294 = vld [vmem:[%s275 + $0x28] sm:$0xff]
        %vm295 = vcmask 195584
        %v297 = vsel %vm295, %v289, 0
        %v300 = vsel %vm295, %v290, 0
        %v303 = vsel %vm295, %v291, 0
        %v306 = vsel %vm295, %v292, 0
        %v309 = vsel %vm295, %v293, 0
        %v312 = vsel %vm295, %v294, 0
        %314 = vmatprep.subr.mxu0 %v284
        %315 = vmatpush1.msra.mxu0 %v283
        %316 = vmatprep.subr.mxu0 %v286
        %317 = vmatpush1.msra.mxu0 %v285
        %318 = vmatprep.subr.mxu0 %v288
        %319 = vmatpush1.msra.mxu0 %v287
        %320 = vmatprep.subr.mxu0 0.0
        %321 = vmatpush1.msra.mxu0 0.0
        %322 = vmatprep.subr.mxu0 0.0
        %323 = vmatpush1.msra.mxu0 0.0
        %324 = vmatprep.subr.mxu0 0.0
        %325 = vmatpush1.msra.mxu0 0.0
        %326 = vmatprep.subr.mxu0 0.0
        %327 = vmatpush1.msra.mxu0 0.0
        %328 = vmatprep.subr.mxu0 0.0
        %329 = vmatpush1.msra.mxu0 0.0
        %330 = vmatprep.subr.mxu0 0.0
        %331 = vmatpush1.msra.mxu0 0.0
        %332 = vmatprep.subr.mxu0 0.0
        %333 = vmatpush1.msra.mxu0 0.0
        %334 = vmatprep.subr.mxu0 0.0
        %335 = vmatpush1.msra.mxu0 0.0
        %336 = vmatprep.subr.mxu0 0.0
        %337 = vmatpush1.msra.mxu0 0.0
        %338 = vmatprep.subr.mxu0 0.0
        %339 = vmatpush1.msra.mxu0 0.0
        %340 = vmatprep.subr.mxu0 0.0
        %341 = vmatpush1.msra.mxu0 0.0
        %342 = vmatprep.subr.mxu0 0.0
        %343 = vmatpush1.msra.mxu0 0.0
        %344 = vmatprep.subr.mxu0 0.0
        %345 = vmatpush1.msra.mxu0 0.0
        %346 = vmatprep.subr.mxu0 0.0
        %347 = vmatpush1.msra.mxu0 0.0
        %348 = vmatprep.subr.mxu0 0.0
        %349 = vmatpush1.msra.mxu0 0.0
        %350 = vmatprep.subr.mxu0 0.0
        %351 = vmatpush1.msra.mxu0 0.0
        %352 = vmatprep.subr.mxu0 0.0
        %353 = vmatpush1.msra.mxu0 0.0
        %354 = vmatprep.subr.mxu0 0.0
        %355 = vmatpush1.msra.mxu0 0.0
        %356 = vmatprep.subr.mxu0 0.0
        %357 = vmatpush1.msra.mxu0 0.0
        %358 = vmatprep.subr.mxu0 0.0
        %359 = vmatpush1.msra.mxu0 0.0
        %360 = vmatprep.subr.mxu0 0.0
        %361 = vmatpush1.msra.mxu0 0.0
        %362 = vmatprep.subr.mxu0 0.0
        %363 = vmatpush1.msra.mxu0 0.0
        %364 = vmatprep.subr.mxu0 0.0
        %365 = vmatpush1.msra.mxu0 0.0
        %366 = vmatprep.subr.mxu0 0.0
        %367 = vmatpush1.msra.mxu0 0.0
        %368 = vmatprep.subr.mxu0 0.0
        %369 = vmatpush1.msra.mxu0 0.0
        %370 = vmatprep.subr.mxu0 0.0
        %371 = vmatpush1.msra.mxu0 0.0
        %372 = vmatprep.subr.mxu0 0.0
        %373 = vmatpush1.msra.mxu0 0.0
        %374 = vmatprep.subr.mxu0 0.0
        %375 = vmatpush1.msra.mxu0 0.0
        %376 = vmatprep.subr.mxu0 0.0
        %377 = vmatpush1.msra.mxu0 0.0
        %378 = vmatprep.mubr.f32.mxu0 0.0
        %379 = vmatmul.mubr.f32.gmra.mrb[0].mxu0 %v297
        %v380 = vpop.f32.mrb[0].mxu0
        %v381 = vadd.f32 0.0, %v380
        %v382 = vpop.f32.mrb[0].mxu0
        %v383 = vadd.f32 0.0, %v382
        %384 = vmatprep.mubr.f32.mxu0 0.0
        %385 = vmatmul.mubr.f32.gmra.mrb[0].mxu0 %v300
        %v386 = vpop.f32.mrb[0].mxu0
        %v387 = vadd.f32 0.0, %v386
        %v388 = vpop.f32.mrb[0].mxu0
        %v389 = vadd.f32 0.0, %v388
        %390 = vmatprep.mubr.f32.mxu0 0.0
        %391 = vmatmul.mubr.f32.gmra.mrb[0].mxu0 %v303
        %v392 = vpop.f32.mrb[0].mxu0
        %v393 = vadd.f32 0.0, %v392
        %v394 = vpop.f32.mrb[0].mxu0
        %v395 = vadd.f32 0.0, %v394
        %396 = vmatprep.mubr.f32.mxu0 0.0
        %397 = vmatmul.mubr.f32.gmra.mrb[0].mxu0 %v306
        %v398 = vpop.f32.mrb[0].mxu0
        %v399 = vadd.f32 0.0, %v398
        %v400 = vpop.f32.mrb[0].mxu0
        %v401 = vadd.f32 0.0, %v400
        %402 = vmatprep.mubr.f32.mxu0 0.0
        %403 = vmatmul.mubr.f32.gmra.mrb[0].mxu0 %v309
        %v404 = vpop.f32.mrb[0].mxu0
        %v405 = vadd.f32 0.0, %v404
        %v406 = vpop.f32.mrb[0].mxu0
        %v407 = vadd.f32 0.0, %v406
        %408 = vmatprep.mubr.f32.mxu0 0.0
        %409 = vmatmul.mubr.f32.gmra.mrb[0].mxu0 %v312
        %v410 = vpop.f32.mrb[0].mxu0
        %v411 = vadd.f32 0.0, %v410
        %v412 = vpop.f32.mrb[0].mxu0
        %v413 = vadd.f32 0.0, %v412
        %414 = vdwg.mxu0
        %415 = vst [vmem:[#allocation2] sm:$0xff] %v381
        %416 = vst [vmem:[#allocation2 + $0x8] sm:$0xff] %v383
        %417 = vst [vmem:[#allocation2 + $0x10] sm:$0xff] %v387
        %418 = vst [vmem:[#allocation2 + $0x18] sm:$0xff] %v389
        %419 = vst [vmem:[#allocation2 + $0x20] sm:$0xff] %v393
        %420 = vst [vmem:[#allocation2 + $0x28] sm:$0xff] %v395
        %421 = vst [vmem:[#allocation2 + $0x30] sm:$0xff] %v399
        %422 = vst [vmem:[#allocation2 + $0x38] sm:$0xff] %v401
        %423 = vst [vmem:[#allocation2 + $0x40] sm:$0xff] %v405
        %424 = vst [vmem:[#allocation2 + $0x48] sm:$0xff] %v407
        %425 = vst [vmem:[#allocation2 + $0x50] sm:$0xff] %v411
        %426 = vst [vmem:[#allocation2 + $0x58] sm:$0xff] %v413
        %v427 = vld [vmem:[%s229] sm:$0xff]
        %v428 = vld [vmem:[%s229 + $0x8] sm:$0xff]
        %v429 = vld [vmem:[%s229 + $0x10] sm:$0xff]
        %v430 = vld [vmem:[%s229 + $0x18] sm:$0xff]
        %v431 = vld [vmem:[%s229 + $0x20] sm:$0xff]
        %v432 = vld [vmem:[%s229 + $0x28] sm:$0xff]
        %v433 = vld [vmem:[%s229 + $0x30] sm:$0xff]
        %v434 = vld [vmem:[%s229 + $0x38] sm:$0xff]
        %v435 = vld [vmem:[%s229 + $0x40] sm:$0xff]
        %v436 = vld [vmem:[%s229 + $0x48] sm:$0xff]
        %v437 = vld [vmem:[%s229 + $0x50] sm:$0xff]
        %v438 = vld [vmem:[%s229 + $0x58] sm:$0xff]
        %v439 = vld [vmem:[%s229 + $0x60] sm:$0xff]
        %v440 = vld [vmem:[%s229 + $0x68] sm:$0xff]
        %v441 = vld [vmem:[%s229 + $0x70] sm:$0xff]
        %v442 = vld [vmem:[%s229 + $0x78] sm:$0xff]
        %v443 = vld [vmem:[%s229 + $0x80] sm:$0xff]
        %v444 = vld [vmem:[%s229 + $0x88] sm:$0xff]
        %v445 = vld [vmem:[%s229 + $0x90] sm:$0xff]
        %v446 = vld [vmem:[%s229 + $0x98] sm:$0xff]
        %v447 = vld [vmem:[%s229 + $0xa0] sm:$0xff]
        %v448 = vld [vmem:[%s229 + $0xa8] sm:$0xff]
        %v449 = vld [vmem:[%s229 + $0xb0] sm:$0xff]
        %v450 = vld [vmem:[%s229 + $0xb8] sm:$0xff]
        %v451 = vld [vmem:[%s229 + $0xc0] sm:$0xff]
        %v452 = vld [vmem:[%s229 + $0xc8] sm:$0xff]
        %v453 = vld [vmem:[%s229 + $0xd0] sm:$0xff]
        %v454 = vld [vmem:[%s229 + $0xd8] sm:$0xff]
        %v455 = vld [vmem:[%s229 + $0xe0] sm:$0xff]
        %v456 = vld [vmem:[%s229 + $0xe8] sm:$0xff]
        %v457 = vld [vmem:[%s229 + $0xf0] sm:$0xff]
        %v458 = vld [vmem:[%s229 + $0xf8] sm:$0xff]
        %v459 = vld [vmem:[%s229 + $0x100] sm:$0xff]
        %v460 = vld [vmem:[%s229 + $0x108] sm:$0xff]
        %v461 = vld [vmem:[%s229 + $0x110] sm:$0xff]
        %v462 = vld [vmem:[%s229 + $0x118] sm:$0xff]
        %v463 = vld [vmem:[%s229 + $0x120] sm:$0xff]
        %v464 = vld [vmem:[%s229 + $0x128] sm:$0xff]
        %v465 = vld [vmem:[%s229 + $0x130] sm:$0xff]
        %v466 = vld [vmem:[%s229 + $0x138] sm:$0xff]
        %v467 = vld [vmem:[%s229 + $0x140] sm:$0xff]
        %v468 = vld [vmem:[%s229 + $0x148] sm:$0xff]
        %v469 = vld [vmem:[%s229 + $0x150] sm:$0xff]
        %v470 = vld [vmem:[%s229 + $0x158] sm:$0xff]
        %v471 = vld [vmem:[%s229 + $0x160] sm:$0xff]
        %v472 = vld [vmem:[%s229 + $0x168] sm:$0xff]
        %v473 = vld [vmem:[%s229 + $0x170] sm:$0xff]
        %v474 = vld [vmem:[%s229 + $0x178] sm:$0xff]
        %v475 = vld [vmem:[%s229 + $0x180] sm:$0xff]
        %v476 = vld [vmem:[%s229 + $0x188] sm:$0xff]
        %v477 = vld [vmem:[%s229 + $0x190] sm:$0xff]
        %v478 = vld [vmem:[%s229 + $0x198] sm:$0xff]
        %v479 = vld [vmem:[%s229 + $0x1a0] sm:$0xff]
        %v480 = vld [vmem:[%s229 + $0x1a8] sm:$0xff]
        %v481 = vld [vmem:[%s229 + $0x1b0] sm:$0xff]
        %v482 = vld [vmem:[%s229 + $0x1b8] sm:$0xff]
        %v483 = vld [vmem:[%s229 + $0x1c0] sm:$0xff]
        %v484 = vld [vmem:[%s229 + $0x1c8] sm:$0xff]
        %v485 = vld [vmem:[%s229 + $0x1d0] sm:$0xff]
        %v486 = vld [vmem:[%s229 + $0x1d8] sm:$0xff]
        %v487 = vld [vmem:[%s229 + $0x1e0] sm:$0xff]
        %v488 = vld [vmem:[%s229 + $0x1e8] sm:$0xff]
        %v489 = vld [vmem:[%s229 + $0x1f0] sm:$0xff]
        %v490 = vld [vmem:[%s229 + $0x1f8] sm:$0xff]
        %v491 = vld [vmem:[%s229 + $0x200] sm:$0xff]
        %v492 = vld [vmem:[%s229 + $0x208] sm:$0xff]
        %v493 = vld [vmem:[%s229 + $0x210] sm:$0xff]
        %v494 = vld [vmem:[%s229 + $0x218] sm:$0xff]
        %v495 = vld [vmem:[%s229 + $0x220] sm:$0xff]
        %v496 = vld [vmem:[%s229 + $0x228] sm:$0xff]
        %v497 = vld [vmem:[%s229 + $0x230] sm:$0xff]
        %v498 = vld [vmem:[%s229 + $0x238] sm:$0xff]
        %v499 = vld [vmem:[%s229 + $0x240] sm:$0xff]
        %v500 = vld [vmem:[%s229 + $0x248] sm:$0xff]
        %v501 = vld [vmem:[%s229 + $0x250] sm:$0xff]
        %v502 = vld [vmem:[%s229 + $0x258] sm:$0xff]
        %v503 = vld [vmem:[%s229 + $0x260] sm:$0xff]
        %v504 = vld [vmem:[%s229 + $0x268] sm:$0xff]
        %v505 = vld [vmem:[%s229 + $0x270] sm:$0xff]
        %v506 = vld [vmem:[%s229 + $0x278] sm:$0xff]
        %v507 = vld [vmem:[%s229 + $0x280] sm:$0xff]
        %v508 = vld [vmem:[%s229 + $0x288] sm:$0xff]
        %v509 = vld [vmem:[%s229 + $0x290] sm:$0xff]
        %v510 = vld [vmem:[%s229 + $0x298] sm:$0xff]
        %v511 = vld [vmem:[%s229 + $0x2a0] sm:$0xff]
        %v512 = vld [vmem:[%s229 + $0x2a8] sm:$0xff]
        %v513 = vld [vmem:[%s229 + $0x2b0] sm:$0xff]
        %v514 = vld [vmem:[%s229 + $0x2b8] sm:$0xff]
        %v515 = vld [vmem:[%s229 + $0x2c0] sm:$0xff]
        %v516 = vld [vmem:[%s229 + $0x2c8] sm:$0xff]
        %v517 = vld [vmem:[%s229 + $0x2d0] sm:$0xff]
        %v518 = vld [vmem:[%s229 + $0x2d8] sm:$0xff]
        %v519 = vld [vmem:[%s229 + $0x2e0] sm:$0xff]
        %v520 = vld [vmem:[%s229 + $0x2e8] sm:$0xff]
        %v521 = vld [vmem:[%s229 + $0x2f0] sm:$0xff]
        %v522 = vld [vmem:[%s229 + $0x2f8] sm:$0xff]
        %v523 = vld [vmem:[#allocation2] sm:$0xff]
        %v524 = vld [vmem:[#allocation2 + $0x8] sm:$0xff]
        %v525 = vld [vmem:[#allocation2 + $0x10] sm:$0xff]
        %v526 = vld [vmem:[#allocation2 + $0x18] sm:$0xff]
        %v527 = vld [vmem:[#allocation2 + $0x20] sm:$0xff]
        %v528 = vld [vmem:[#allocation2 + $0x28] sm:$0xff]
        %v529 = vld [vmem:[#allocation2 + $0x30] sm:$0xff]
        %v530 = vld [vmem:[#allocation2 + $0x38] sm:$0xff]
        %v531 = vld [vmem:[#allocation2 + $0x40] sm:$0xff]
        %v532 = vld [vmem:[#allocation2 + $0x48] sm:$0xff]
        %v533 = vld [vmem:[#allocation2 + $0x50] sm:$0xff]
        %v534 = vld [vmem:[#allocation2 + $0x58] sm:$0xff]
        %535 = vmatprep.subr.mxu0 0.0
        %536 = vmatpush1.msra.mxu0 %v427
        %537 = vmatprep.subr.mxu0 0.0
        %538 = vmatpush1.msra.mxu0 %v428
        %539 = vmatprep.subr.mxu0 0.0
        %540 = vmatpush1.msra.mxu0 %v429
        %541 = vmatprep.subr.mxu0 0.0
        %542 = vmatpush1.msra.mxu0 %v430
        %543 = vmatprep.subr.mxu0 0.0
        %544 = vmatpush1.msra.mxu0 %v431
        %545 = vmatprep.subr.mxu0 0.0
        %546 = vmatpush1.msra.mxu0 %v432
        %547 = vmatprep.subr.mxu0 0.0
        %548 = vmatpush1.msra.mxu0 %v433
        %549 = vmatprep.subr.mxu0 0.0
        %550 = vmatpush1.msra.mxu0 %v434
        %551 = vmatprep.subr.mxu0 0.0
        %552 = vmatpush1.msra.mxu0 %v435
        %553 = vmatprep.subr.mxu0 0.0
        %554 = vmatpush1.msra.mxu0 %v436
        %555 = vmatprep.subr.mxu0 0.0
        %556 = vmatpush1.msra.mxu0 %v437
        %557 = vmatprep.subr.mxu0 0.0
        %558 = vmatpush1.msra.mxu0 %v438
        %559 = vmatprep.subr.mxu0 0.0
        %560 = vmatpush1.msra.mxu0 %v439
        %561 = vmatprep.subr.mxu0 0.0
        %562 = vmatpush1.msra.mxu0 %v440
        %563 = vmatprep.subr.mxu0 0.0
        %564 = vmatpush1.msra.mxu0 %v441
        %565 = vmatprep.subr.mxu0 0.0
        %566 = vmatpush1.msra.mxu0 %v442
        %567 = vmatprep.subr.mxu0 0.0
        %568 = vmatpush1.msra.mxu0 %v443
        %569 = vmatprep.subr.mxu0 0.0
        %570 = vmatpush1.msra.mxu0 %v444
        %571 = vmatprep.subr.mxu0 0.0
        %572 = vmatpush1.msra.mxu0 %v445
        %573 = vmatprep.subr.mxu0 0.0
        %574 = vmatpush1.msra.mxu0 %v446
        %575 = vmatprep.subr.mxu0 0.0
        %576 = vmatpush1.msra.mxu0 %v447
        %577 = vmatprep.subr.mxu0 0.0
        %578 = vmatpush1.msra.mxu0 %v448
        %579 = vmatprep.subr.mxu0 0.0
        %580 = vmatpush1.msra.mxu0 %v449
        %581 = vmatprep.subr.mxu0 0.0
        %582 = vmatpush1.msra.mxu0 %v450
        %583 = vmatprep.subr.mxu0 0.0
        %584 = vmatpush1.msra.mxu0 %v451
        %585 = vmatprep.subr.mxu0 0.0
        %586 = vmatpush1.msra.mxu0 %v452
        %587 = vmatprep.subr.mxu0 0.0
        %588 = vmatpush1.msra.mxu0 %v453
        %589 = vmatprep.subr.mxu0 0.0
        %590 = vmatpush1.msra.mxu0 %v454
        %591 = vmatprep.subr.mxu0 0.0
        %592 = vmatpush1.msra.mxu0 %v455
        %593 = vmatprep.subr.mxu0 0.0
        %594 = vmatpush1.msra.mxu0 %v456
        %595 = vmatprep.subr.mxu0 0.0
        %596 = vmatpush1.msra.mxu0 %v457
        %597 = vmatprep.subr.mxu0 0.0
        %598 = vmatpush1.msra.mxu0 %v458
        %599 = vmatprep.mubr.f32.mxu0 %v524
        %600 = vmatmul.mubr.f32.gmra.mrb[0].mxu0 %v523
        %v601 = vpop.f32.mrb[0].mxu0
        %v602 = vadd.f32 0.0, %v601
        %v603 = vpop.f32.mrb[0].mxu0
        %604 = vmatprep.mubr.f32.mxu0 %v526
        %605 = vmatmul.mubr.f32.gmra.mrb[0].mxu0 %v525
        %v606 = vpop.f32.mrb[0].mxu0
        %v607 = vadd.f32 0.0, %v606
        %v608 = vpop.f32.mrb[0].mxu0
        %609 = vdwg.mxu0
        %610 = vmatprep.subr.mxu0 0.0
        %611 = vmatpush1.msra.mxu0 %v459
        %612 = vmatprep.subr.mxu0 0.0
        %613 = vmatpush1.msra.mxu0 %v460
        %614 = vmatprep.subr.mxu0 0.0
        %615 = vmatpush1.msra.mxu0 %v461
        %616 = vmatprep.subr.mxu0 0.0
        %617 = vmatpush1.msra.mxu0 %v462
        %618 = vmatprep.subr.mxu0 0.0
        %619 = vmatpush1.msra.mxu0 %v463
        %620 = vmatprep.subr.mxu0 0.0
        %621 = vmatpush1.msra.mxu0 %v464
        %622 = vmatprep.subr.mxu0 0.0
        %623 = vmatpush1.msra.mxu0 %v465
        %624 = vmatprep.subr.mxu0 0.0
        %625 = vmatpush1.msra.mxu0 %v466
        %626 = vmatprep.subr.mxu0 0.0
        %627 = vmatpush1.msra.mxu0 %v467
        %628 = vmatprep.subr.mxu0 0.0
        %629 = vmatpush1.msra.mxu0 %v468
        %630 = vmatprep.subr.mxu0 0.0
        %631 = vmatpush1.msra.mxu0 %v469
        %632 = vmatprep.subr.mxu0 0.0
        %633 = vmatpush1.msra.mxu0 %v470
        %634 = vmatprep.subr.mxu0 0.0
        %635 = vmatpush1.msra.mxu0 %v471
        %636 = vmatprep.subr.mxu0 0.0
        %637 = vmatpush1.msra.mxu0 %v472
        %638 = vmatprep.subr.mxu0 0.0
        %639 = vmatpush1.msra.mxu0 %v473
        %640 = vmatprep.subr.mxu0 0.0
        %641 = vmatpush1.msra.mxu0 %v474
        %642 = vmatprep.subr.mxu0 0.0
        %643 = vmatpush1.msra.mxu0 %v475
        %644 = vmatprep.subr.mxu0 0.0
        %645 = vmatpush1.msra.mxu0 %v476
        %646 = vmatprep.subr.mxu0 0.0
        %647 = vmatpush1.msra.mxu0 %v477
        %648 = vmatprep.subr.mxu0 0.0
        %649 = vmatpush1.msra.mxu0 %v478
        %650 = vmatprep.subr.mxu0 0.0
        %651 = vmatpush1.msra.mxu0 %v479
        %652 = vmatprep.subr.mxu0 0.0
        %653 = vmatpush1.msra.mxu0 %v480
        %654 = vmatprep.subr.mxu0 0.0
        %655 = vmatpush1.msra.mxu0 %v481
        %656 = vmatprep.subr.mxu0 0.0
        %657 = vmatpush1.msra.mxu0 %v482
        %658 = vmatprep.subr.mxu0 0.0
        %659 = vmatpush1.msra.mxu0 %v483
        %660 = vmatprep.subr.mxu0 0.0
        %661 = vmatpush1.msra.mxu0 %v484
        %662 = vmatprep.subr.mxu0 0.0
        %663 = vmatpush1.msra.mxu0 %v485
        %664 = vmatprep.subr.mxu0 0.0
        %665 = vmatpush1.msra.mxu0 %v486
        %666 = vmatprep.subr.mxu0 0.0
        %667 = vmatpush1.msra.mxu0 %v487
        %668 = vmatprep.subr.mxu0 0.0
        %669 = vmatpush1.msra.mxu0 %v488
        %670 = vmatprep.subr.mxu0 0.0
        %671 = vmatpush1.msra.mxu0 %v489
        %672 = vmatprep.subr.mxu0 0.0
        %673 = vmatpush1.msra.mxu0 %v490
        %674 = vmatprep.mubr.f32.mxu0 %v528
        %675 = vmatmul.mubr.f32.gmra.mrb[0].mxu0 %v527
        %v676 = vpop.f32.mrb[0].mxu0
        %v677 = vadd.f32 %v602, %v676
        %v678 = vpop.f32.mrb[0].mxu0
        %679 = vmatprep.mubr.f32.mxu0 %v530
        %680 = vmatmul.mubr.f32.gmra.mrb[0].mxu0 %v529
        %v681 = vpop.f32.mrb[0].mxu0
        %v682 = vadd.f32 %v607, %v681
        %v683 = vpop.f32.mrb[0].mxu0
        %684 = vdwg.mxu0
        %685 = vmatprep.subr.mxu0 0.0
        %686 = vmatpush1.msra.mxu0 %v491
        %687 = vmatprep.subr.mxu0 0.0
        %688 = vmatpush1.msra.mxu0 %v492
        %689 = vmatprep.subr.mxu0 0.0
        %690 = vmatpush1.msra.mxu0 %v493
        %691 = vmatprep.subr.mxu0 0.0
        %692 = vmatpush1.msra.mxu0 %v494
        %693 = vmatprep.subr.mxu0 0.0
        %694 = vmatpush1.msra.mxu0 %v495
        %695 = vmatprep.subr.mxu0 0.0
        %696 = vmatpush1.msra.mxu0 %v496
        %697 = vmatprep.subr.mxu0 0.0
        %698 = vmatpush1.msra.mxu0 %v497
        %699 = vmatprep.subr.mxu0 0.0
        %700 = vmatpush1.msra.mxu0 %v498
        %701 = vmatprep.subr.mxu0 0.0
        %702 = vmatpush1.msra.mxu0 %v499
        %703 = vmatprep.subr.mxu0 0.0
        %704 = vmatpush1.msra.mxu0 %v500
        %705 = vmatprep.subr.mxu0 0.0
        %706 = vmatpush1.msra.mxu0 %v501
        %707 = vmatprep.subr.mxu0 0.0
        %708 = vmatpush1.msra.mxu0 %v502
        %709 = vmatprep.subr.mxu0 0.0
        %710 = vmatpush1.msra.mxu0 %v503
        %711 = vmatprep.subr.mxu0 0.0
        %712 = vmatpush1.msra.mxu0 %v504
        %713 = vmatprep.subr.mxu0 0.0
        %714 = vmatpush1.msra.mxu0 %v505
        %715 = vmatprep.subr.mxu0 0.0
        %716 = vmatpush1.msra.mxu0 %v506
        %717 = vmatprep.subr.mxu0 0.0
        %718 = vmatpush1.msra.mxu0 %v507
        %719 = vmatprep.subr.mxu0 0.0
        %720 = vmatpush1.msra.mxu0 %v508
        %721 = vmatprep.subr.mxu0 0.0
        %722 = vmatpush1.msra.mxu0 %v509
        %723 = vmatprep.subr.mxu0 0.0
        %724 = vmatpush1.msra.mxu0 %v510
        %725 = vmatprep.subr.mxu0 0.0
        %726 = vmatpush1.msra.mxu0 %v511
        %727 = vmatprep.subr.mxu0 0.0
        %728 = vmatpush1.msra.mxu0 %v512
        %729 = vmatprep.subr.mxu0 0.0
        %730 = vmatpush1.msra.mxu0 %v513
        %731 = vmatprep.subr.mxu0 0.0
        %732 = vmatpush1.msra.mxu0 %v514
        %733 = vmatprep.subr.mxu0 0.0
        %734 = vmatpush1.msra.mxu0 %v515
        %735 = vmatprep.subr.mxu0 0.0
        %736 = vmatpush1.msra.mxu0 %v516
        %737 = vmatprep.subr.mxu0 0.0
        %738 = vmatpush1.msra.mxu0 %v517
        %739 = vmatprep.subr.mxu0 0.0
        %740 = vmatpush1.msra.mxu0 %v518
        %741 = vmatprep.subr.mxu0 0.0
        %742 = vmatpush1.msra.mxu0 %v519
        %743 = vmatprep.subr.mxu0 0.0
        %744 = vmatpush1.msra.mxu0 %v520
        %745 = vmatprep.subr.mxu0 0.0
        %746 = vmatpush1.msra.mxu0 %v521
        %747 = vmatprep.subr.mxu0 0.0
        %748 = vmatpush1.msra.mxu0 %v522
        %749 = vmatprep.mubr.f32.mxu0 %v532
        %750 = vmatmul.mubr.f32.gmra.mrb[0].mxu0 %v531
        %v751 = vpop.f32.mrb[0].mxu0
        %v752 = vadd.f32 %v677, %v751
        %v753 = vpop.f32.mrb[0].mxu0
        %754 = vmatprep.mubr.f32.mxu0 %v534
        %755 = vmatmul.mubr.f32.gmra.mrb[0].mxu0 %v533
        %v756 = vpop.f32.mrb[0].mxu0
        %v757 = vadd.f32 %v682, %v756
        %v758 = vpop.f32.mrb[0].mxu0
        %759 = vdwg.mxu0
        %760 = vst [vmem:[%s270] sm:$0xff] %v752
        %761 = vst [vmem:[%s270 + $0x8] sm:$0xff] %v757
        %s762 = sand.u32 %s134, 1
        %s763 = scalar_lea.sflag [#allocation5], %s762
        %s764 = sand.u32 %s134, 1
        %s765 = smul.addr %s764, 16
        %s766 = scalar_lea.vmem [#allocation8], %s765
        // Predicated region
        $region41: #{tpu_custom_call.1} parent=31 // pred_check
          %p767 = pneg %p144
        $region42: #{tpu_custom_call.1} parent=31 // pred_check_branch
          %769 = sbr.rel (%p767) target = $region44
        $region43: #{tpu_custom_call.1} parent=31 // pred_region
          %s770 = smul.u32 2, %s30
          %s772 = ssub.s32 256, 256
          %773 = vsyncadd %s763, %s772
          %s774 = smul.addr %s29, 2
          %s775 = sadd.s32 %s770, %s774
          %s776 = smul.addr %s28, 6
          %s777 = sadd.s32 %s775, %s776
          %s778 = smul.addr %s777, 128
          %s779 = scalar_lea.hbm %s3, %s778
          %s780 = sshll.u32 %s766, 4
          %s781 = int_to_ptr.vmem [resolvable:$true] %s780
          %786 = dma.vmem_to_hbm [thread:$0]  %s781, 256, %s779, %s763, 128, 128, 8
        $region44: #{tpu_custom_call.1} parent=31 // pred_fallthru
          _
      $region32: #{tpu_custom_call.1} parent=5 // pred_fallthru
        _
      %p787 = scmp.le.s32.totalorder 2, %s18
      // Predicated region
      $region45: #{tpu_custom_call.1} parent=5 // pred_check
        %p788 = pneg %p787
      $region46: #{tpu_custom_call.1} parent=5 // pred_check_branch
        %790 = sbr.rel (%p788) target = $region48
      $region47: #{tpu_custom_call.1} parent=5 // pred_region
        %s791 = ssub.s32 %s18, 2
        // Predicated region
        $region49: #{tpu_custom_call.1} parent=47 // pred_check
          %p792 = pneg %p150
        $region50: #{tpu_custom_call.1} parent=47 // pred_check_branch
          %794 = sbr.rel (%p792) target = $region52
        $region51: #{tpu_custom_call.1} parent=47 // pred_region
          %s795 = sand.u32 %s135, 1
          %s796 = scalar_lea.sflag [#allocation5], %s795
          %s797 = sand.u32 %s135, 1
          %s798 = smul.addr %s797, 16
          %s799 = scalar_lea.vmem [#allocation8], %s798
          %800 = dma.done %s796, 256
        $region52: #{tpu_custom_call.1} parent=47 // pred_fallthru
          _
      $region48: #{tpu_custom_call.1} parent=5 // pred_fallthru
        _
    $region6: #{tpu_custom_call.1} parent=1 // loop_footer
      %s22 = sadd.s32 1, %s18
    $region7: #{tpu_custom_call.1} parent=1 // loop_footer_branch
      %17 = sbr.rel target = $region3
    $region8: #{tpu_custom_call.1} parent=1 // loop_exit
      _
    %801 = vsyncpa [#allocation4], 1
    %s802 = scalar_lea.sflag [#allocation4], 1
    %803 = vsyncpa %s802, 1
    %804 = vsyncpa [#allocation7], 1
    %s805 = scalar_lea.sflag [#allocation7], 1
    %806 = vsyncpa %s805, 1
    %807 = vsyncpa [#allocation5], 1
    %s808 = scalar_lea.sflag [#allocation5], 1
    %809 = vsyncpa %s808, 1

</llo_original>
